<compile_context>
chip_gen: v7x
topology: tpu7x:2x2x1
jax: 0.10.0
libtpu: 0.0.40
codegen_flags: <defaults>
</compile_context>

<pallas_src>
import math
import functools

import jax
import jax.numpy as jnp
from jax.experimental import pallas as pl
from jax.experimental.pallas import tpu as pltpu

K_PAD = 128  # lane-dense width for the top-k value/index outputs


def _encode_topk_kernel(top_k, xc_ref, wenc_ref, benc_ref, topv_ref, topi_ref):
    """Per (batch tile i, enc tile j): encode tile + online top-k merge."""
    j = pl.program_id(1)
    enc_tile = wenc_ref.shape[1]

    @pl.when(j == 0)
    def _init():
        topv_ref[...] = jnp.full(topv_ref.shape, -jnp.inf, topv_ref.dtype)
        topi_ref[...] = jnp.full(topi_ref.shape, -1, topi_ref.dtype)

    # Encoder matmul for this d_encoder tile (bf16 in, f32 accumulate).
    enc = jnp.dot(xc_ref[...], wenc_ref[...],
                  preferred_element_type=jnp.float32) + benc_ref[...]
    ids_enc = (jax.lax.broadcasted_iota(jnp.int32, enc.shape, 1)
               + j * enc_tile)

    # Running top-k slabs: load once, merge in registers, store once.
    old_v = topv_ref[...]
    old_i = topi_ref[...]
    new_v = old_v
    new_i = old_i
    col = jax.lax.broadcasted_iota(jnp.int32, old_v.shape, 1)  # (B_TILE, K_PAD)

    BIG = jnp.int32(2 ** 30)          # assumes d_encoder < 2**30
    NEG_INF = jnp.float32(-jnp.inf)   # assumes finite activations
    for k in range(top_k):
        m = jnp.maximum(jnp.max(old_v, axis=1, keepdims=True),
                        jnp.max(enc, axis=1, keepdims=True))          # (B, 1)
        sel = jnp.minimum(
            jnp.min(jnp.where(old_v == m, old_i, BIG), axis=1, keepdims=True),
            jnp.min(jnp.where(enc == m, ids_enc, BIG), axis=1, keepdims=True))
        new_v = jnp.where(col == k, m, new_v)
        new_i = jnp.where(col == k, sel, new_i)
        # Knock out exactly the selected entry (indices are globally unique
        # and the old / fresh index ranges are disjoint).
        old_v = jnp.where(old_i == sel, NEG_INF, old_v)
        enc = jnp.where(ids_enc == sel, NEG_INF, enc)

    topv_ref[...] = new_v
    topi_ref[...] = new_i


def _decode_kernel(top_k, topv_ref, topi_ref, wdec_ref, preb_ref, out_ref):
    """Per (batch tile i, enc tile j): scatter selected values, matmul,
    accumulate directly into the resident output block."""
    j = pl.program_id(1)
    enc_tile = wdec_ref.shape[0]
    b_tile = out_ref.shape[0]

    @pl.when(j == 0)
    def _init():
        out_ref[...] = jnp.zeros(out_ref.shape, out_ref.dtype)

    ids_enc = (jax.lax.broadcasted_iota(jnp.int32, (b_tile, enc_tile), 1)
               + j * enc_tile)

    topv = topv_ref[...].astype(jnp.bfloat16)   # whole slab, cast once
    topi = topi_ref[...]

    # Build the sparse (masked_encoded) tile with VPU compare/selects only.
    s = jnp.zeros((b_tile, enc_tile), jnp.bfloat16)
    for k in range(top_k):
        idx_k = topi[:, k:k + 1]          # (B_TILE, 1) int32
        val_k = topv[:, k:k + 1]          # (B_TILE, 1) bf16
        s = jnp.where(ids_enc == idx_k, val_k, s)

    out_ref[...] += jnp.dot(s, wdec_ref[...],
                            preferred_element_type=jnp.float32)

    @pl.when(j == pl.num_programs(1) - 1)
    def _finalize():
        out_ref[...] += preb_ref[...]


def sae_forward(x, pre_bias, encoder_weights, encoder_bias, decoder_weights,
                top_k, *, b_tile=None, enc_tile=None,
                vmem_limit_bytes=48 * 1024 * 1024, weight_buffering=None):
    B, d_model = x.shape
    d_encoder = encoder_weights.shape[1]
    assert encoder_weights.shape == (d_model, d_encoder)
    assert decoder_weights.shape == (d_encoder, d_model)

    # MXU-aligned defaults for realistic shapes (256 fills v6e/v7x MXU M dim;
    # use b_tile=128 on v5e).  Prefer b_tile >= 128 and a multiple of 16.
    if b_tile is None:
        b_tile = min(256, B)
    if enc_tile is None:
        enc_tile = min(512, d_encoder)

    assert B % b_tile == 0 and b_tile % 8 == 0
    assert d_encoder % enc_tile == 0 and enc_tile % 128 == 0
    assert d_model % 128 == 0
    assert 0 < top_k <= K_PAD and top_k <= enc_tile
    assert d_encoder < 2 ** 30   # index sentinel headroom

    n_b = B // b_tile
    n_e = d_encoder // enc_tile

    # bf16 weights: half the HBM traffic / VMEM per tile; f32 accumulation.
    w_enc = encoder_weights.astype(jnp.bfloat16)
    w_dec = decoder_weights.astype(jnp.bfloat16)
    pre_b = pre_bias.reshape(1, d_model).astype(jnp.float32)
    enc_b = encoder_bias.reshape(1, d_encoder).astype(jnp.float32)
    # Hoisted centering: one pass in the wrapper instead of n_e in-kernel
    # subtract+cast passes per batch tile; bf16 matches the matmul input dtype.
    x_c = (x.astype(jnp.float32) - pre_b).astype(jnp.bfloat16)

    if weight_buffering is None:
        w_enc_spec = pl.BlockSpec((d_model, enc_tile), lambda i, j: (0, j))
        w_dec_spec = pl.BlockSpec((enc_tile, d_model), lambda i, j: (j, 0))
    else:
        # e.g. weight_buffering=3 on v5e to hide the slower HBM behind compute.
        w_enc_spec = pl.BlockSpec((d_model, enc_tile), lambda i, j: (0, j),
                                  pipeline_mode=pl.Buffered(weight_buffering))
        w_dec_spec = pl.BlockSpec((enc_tile, d_model), lambda i, j: (j, 0),
                                  pipeline_mode=pl.Buffered(weight_buffering))

    cparams = pltpu.CompilerParams(
        dimension_semantics=("parallel", "arbitrary"),
        vmem_limit_bytes=vmem_limit_bytes,   # 48 MiB default fits v7x's 64 MiB
    )

    # ---- Kernel 1: encode + online top-k --------------------------------
    topv, topi = pl.pallas_call(
        functools.partial(_encode_topk_kernel, top_k),
        out_shape=(
            jax.ShapeDtypeStruct((B, K_PAD), jnp.float32),
            jax.ShapeDtypeStruct((B, K_PAD), jnp.int32),
        ),
        grid_spec=pltpu.PrefetchScalarGridSpec(
            num_scalar_prefetch=0,
            grid=(n_b, n_e),
            in_specs=[
                pl.BlockSpec((b_tile, d_model), lambda i, j: (i, 0)),   # x_c
                w_enc_spec,                                             # W_enc
                pl.BlockSpec((1, enc_tile), lambda i, j: (0, j)),       # b_enc
            ],
            out_specs=(
                pl.BlockSpec((b_tile, K_PAD), lambda i, j: (i, 0)),     # values
                pl.BlockSpec((b_tile, K_PAD), lambda i, j: (i, 0)),     # indices
            ),
        ),
        compiler_params=cparams,
    )(x_c, w_enc, enc_b)

    # ---- Kernel 2: scatter decode (accumulate into resident output) -----
    decoded = pl.pallas_call(
        functools.partial(_decode_kernel, top_k),
        out_shape=jax.ShapeDtypeStruct((B, d_model), jnp.float32),
        grid_spec=pltpu.PrefetchScalarGridSpec(
            num_scalar_prefetch=0,
            grid=(n_b, n_e),
            in_specs=[
                pl.BlockSpec((b_tile, K_PAD), lambda i, j: (i, 0)),     # values
                pl.BlockSpec((b_tile, K_PAD), lambda i, j: (i, 0)),     # indices
                w_dec_spec,                                             # W_dec
                pl.BlockSpec((1, d_model), lambda i, j: (0, 0)),        # pre_bias
            ],
            out_specs=pl.BlockSpec((b_tile, d_model), lambda i, j: (i, 0)),
        ),
        compiler_params=cparams,
    )(topv, topi, w_dec, pre_b)

    return decoded, topi[:, :top_k]


def _reference(x, pre_bias, enc_w_bf16, enc_b, dec_w_bf16, top_k):
    """Pure-JAX reference with matching bf16 matmul inputs / f32 accumulation."""
    centered = (x - pre_bias).astype(jnp.bfloat16)
    encoded = jnp.dot(centered, enc_w_bf16,
                      preferred_element_type=jnp.float32) + enc_b
    _, idx = jax.lax.top_k(encoded, top_k)
    onehot = jax.nn.one_hot(idx, encoded.shape[1], dtype=jnp.float32).sum(axis=1)
    masked = jnp.where(onehot > 0, encoded, 0.0)
    decoded = jnp.dot(masked.astype(jnp.bfloat16), dec_w_bf16,
                      preferred_element_type=jnp.float32) + pre_bias
    return decoded, idx


if __name__ == "__main__":
    # Small shapes that still exercise both grid axes (2 batch tiles x 2 enc
    # tiles); realistic runs should use the larger default tiles.
    B = 32
    d_model = 128
    d_encoder = 512
    top_k = 4

    key = jax.random.PRNGKey(0)
    k_dec, k_x, k_pb, k_eb = jax.random.split(key, 4)

    # Parameters mirroring the PyTorch __init__ (biases made nonzero so the
    # bias paths are actually exercised by the check).
    decoder_weights = (jax.random.normal(k_dec, (d_encoder, d_model), jnp.float32)
                       * math.sqrt(1.0 / d_model))
    encoder_weights = decoder_weights.T  # clone().detach().T
    pre_bias = 0.1 * jax.random.normal(k_pb, (d_model,), jnp.float32)
    encoder_bias = 0.05 * jax.random.normal(k_eb, (d_encoder,), jnp.float32)

    x = jax.random.normal(k_x, (B, d_model), jnp.float32)

    decoded, indices = sae_forward(x, pre_bias, encoder_weights, encoder_bias,
                                   decoder_weights, top_k,
                                   b_tile=16, enc_tile=256)
    decoded = jax.block_until_ready(decoded)
    indices = jax.block_until_ready(indices)

    ref_dec, ref_idx = _reference(x, pre_bias,
                                  encoder_weights.astype(jnp.bfloat16),
                                  encoder_bias,
                                  decoder_weights.astype(jnp.bfloat16),
                                  top_k)

    assert decoded.shape == (B, d_model) and indices.shape == (B, top_k)
    assert jnp.allclose(decoded, ref_dec, atol=2e-2, rtol=2e-2)
    assert jnp.array_equal(jnp.sort(indices, axis=1), jnp.sort(ref_idx, axis=1))

    print("KERNEL_OK")
</pallas_src>

<mosaic_0001>
module attributes {stable_mosaic.version = 11 : i64} {
  func.func @_encode_topk_kernel(%arg0: i32, %arg1: i32, %arg2: memref<16x128xbf16, #tpu.memory_space<vmem>>, %arg3: memref<128x256xbf16, #tpu.memory_space<vmem>>, %arg4: memref<1x256xf32, #tpu.memory_space<vmem>>, %arg5: memref<16x128xf32, #tpu.memory_space<vmem>>, %arg6: memref<16x128xi32, #tpu.memory_space<vmem>>) attributes {dimension_semantics = [#tpu.dimension_semantics<parallel>, #tpu.dimension_semantics<arbitrary>], iteration_bounds = array<i64: 2, 2>, scalar_prefetch = 0 : i64, scratch_operands = 0 : i64, tpu.core_type = #tpu.core_type<tc>, window_params = [{transform_indices = @transform_0, window_bounds = array<i64: 16, 128>}, {transform_indices = @transform_1, window_bounds = array<i64: 128, 256>}, {transform_indices = @transform_2, window_bounds = array<i64: 1, 256>}, {transform_indices = @transform_3, window_bounds = array<i64: 16, 128>}, {transform_indices = @transform_4, window_bounds = array<i64: 16, 128>}]} {
    %c0_i32 = arith.constant 0 : i32
    %0 = arith.cmpi eq, %arg1, %c0_i32 : i32
    %1 = arith.extui %0 : i1 to i32
    %c0_i32_0 = arith.constant 0 : i32
    %2 = arith.cmpi ne, %1, %c0_i32_0 : i32
    scf.if %2 {
      %cst_48 = arith.constant 0xFF800000 : f32
      %154 = vector.broadcast %cst_48 : f32 to vector<16x128xf32>
      %c0_49 = arith.constant 0 : index
      %c0_50 = arith.constant 0 : index
      %155 = vector.load %arg5[%c0_49, %c0_50] : memref<16x128xf32, #tpu.memory_space<vmem>>, vector<16x128xf32>
      tpu.vector_store %arg5[%c0_49, %c0_50], %154 {strides = array<i32>} : memref<16x128xf32, #tpu.memory_space<vmem>>, vector<16x128xf32>,
      %c-1_i32 = arith.constant -1 : i32
      %156 = vector.broadcast %c-1_i32 : i32 to vector<16x128xi32>
      %c0_51 = arith.constant 0 : index
      %c0_52 = arith.constant 0 : index
      %157 = vector.load %arg6[%c0_51, %c0_52] : memref<16x128xi32, #tpu.memory_space<vmem>>, vector<16x128xi32>
      tpu.vector_store %arg6[%c0_51, %c0_52], %156 {strides = array<i32>} : memref<16x128xi32, #tpu.memory_space<vmem>>, vector<16x128xi32>,
    } else {
    }
    %c0 = arith.constant 0 : index
    %c0_1 = arith.constant 0 : index
    %3 = vector.load %arg2[%c0, %c0_1] : memref<16x128xbf16, #tpu.memory_space<vmem>>, vector<16x128xbf16>
    %c0_2 = arith.constant 0 : index
    %c0_3 = arith.constant 0 : index
    %4 = vector.load %arg3[%c0_2, %c0_3] : memref<128x256xbf16, #tpu.memory_space<vmem>>, vector<128x256xbf16>
    %cst = arith.constant dense<0.000000e+00> : vector<16x256xf32>
    %5 = tpu.matmul %3, %4, %cst {dimension_numbers = #tpu.dot_dimension_numbers<[1], [0], [0], [1], [0, 0, 1, 1], [], []>} : vector<16x128xbf16>, vector<128x256xbf16>, vector<16x256xf32> -> vector<16x256xf32>
    %c0_4 = arith.constant 0 : index
    %c0_5 = arith.constant 0 : index
    %6 = vector.load %arg4[%c0_4, %c0_5] : memref<1x256xf32, #tpu.memory_space<vmem>>, vector<1x256xf32>
    %7 = vector.broadcast %6 : vector<1x256xf32> to vector<16x256xf32>
    %8 = arith.addf %5, %7 : vector<16x256xf32>
    %9 = tpu.iota {dimensions = array<i32: 1>} : vector<16x256xi32>
    %c256_i32 = arith.constant 256 : i32
    %10 = arith.muli %arg1, %c256_i32 : i32
    %11 = vector.broadcast %10 : i32 to vector<16x256xi32>
    %12 = arith.addi %9, %11 : vector<16x256xi32>
    %c0_6 = arith.constant 0 : index
    %c0_7 = arith.constant 0 : index
    %13 = vector.load %arg5[%c0_6, %c0_7] : memref<16x128xf32, #tpu.memory_space<vmem>>, vector<16x128xf32>
    %c0_8 = arith.constant 0 : index
    %c0_9 = arith.constant 0 : index
    %14 = vector.load %arg6[%c0_8, %c0_9] : memref<16x128xi32, #tpu.memory_space<vmem>>, vector<16x128xi32>
    %15 = tpu.iota {dimensions = array<i32: 1>} : vector<16x128xi32>
    %cst_10 = arith.constant dense<0xFF800000> : vector<16xf32>
    %16 = vector.multi_reduction <maximumf>, %13, %cst_10 [1] : vector<16x128xf32> to vector<16xf32>
    %17 = vector.shape_cast %16 : vector<16xf32> to vector<16x1xf32>
    %cst_11 = arith.constant dense<0xFF800000> : vector<16xf32>
    %18 = vector.multi_reduction <maximumf>, %8, %cst_11 [1] : vector<16x256xf32> to vector<16xf32>
    %19 = vector.shape_cast %18 : vector<16xf32> to vector<16x1xf32>
    %20 = arith.maximumf %17, %19 : vector<16x1xf32>
    %21 = vector.broadcast %20 : vector<16x1xf32> to vector<16x128xf32>
    %22 = arith.cmpf oeq, %13, %21 : vector<16x128xf32>
    %c1073741824_i32 = arith.constant 1073741824 : i32
    %23 = vector.broadcast %c1073741824_i32 : i32 to vector<16x128xi32>
    %24 = arith.select %22, %14, %23 : vector<16x128xi1>, vector<16x128xi32>
    %cst_12 = arith.constant dense<2147483647> : vector<16xi32>
    %25 = vector.multi_reduction <minsi>, %24, %cst_12 [1] : vector<16x128xi32> to vector<16xi32>
    %26 = vector.shape_cast %25 : vector<16xi32> to vector<16x1xi32>
    %27 = vector.broadcast %20 : vector<16x1xf32> to vector<16x256xf32>
    %28 = arith.cmpf oeq, %8, %27 : vector<16x256xf32>
    %c1073741824_i32_13 = arith.constant 1073741824 : i32
    %29 = vector.broadcast %c1073741824_i32_13 : i32 to vector<16x256xi32>
    %30 = arith.select %28, %12, %29 : vector<16x256xi1>, vector<16x256xi32>
    %cst_14 = arith.constant dense<2147483647> : vector<16xi32>
    %31 = vector.multi_reduction <minsi>, %30, %cst_14 [1] : vector<16x256xi32> to vector<16xi32>
    %32 = vector.shape_cast %31 : vector<16xi32> to vector<16x1xi32>
    %33 = arith.minsi %26, %32 : vector<16x1xi32>
    %c0_i32_15 = arith.constant 0 : i32
    %34 = vector.broadcast %c0_i32_15 : i32 to vector<16x128xi32>
    %35 = arith.cmpi eq, %15, %34 : vector<16x128xi32>
    %36 = vector.shape_cast %20 : vector<16x1xf32> to vector<16x1xf32>
    %37 = vector.broadcast %36 : vector<16x1xf32> to vector<16x128xf32>
    %38 = arith.select %35, %37, %13 : vector<16x128xi1>, vector<16x128xf32>
    %c0_i32_16 = arith.constant 0 : i32
    %39 = vector.broadcast %c0_i32_16 : i32 to vector<16x128xi32>
    %40 = arith.cmpi eq, %15, %39 : vector<16x128xi32>
    %41 = vector.shape_cast %33 : vector<16x1xi32> to vector<16x1xi32>
    %42 = vector.broadcast %41 : vector<16x1xi32> to vector<16x128xi32>
    %43 = arith.select %40, %42, %14 : vector<16x128xi1>, vector<16x128xi32>
    %44 = vector.broadcast %33 : vector<16x1xi32> to vector<16x128xi32>
    %45 = arith.cmpi eq, %14, %44 : vector<16x128xi32>
    %cst_17 = arith.constant 0xFF800000 : f32
    %46 = vector.broadcast %cst_17 : f32 to vector<16x128xf32>
    %47 = arith.select %45, %46, %13 : vector<16x128xi1>, vector<16x128xf32>
    %48 = vector.broadcast %33 : vector<16x1xi32> to vector<16x256xi32>
    %49 = arith.cmpi eq, %12, %48 : vector<16x256xi32>
    %cst_18 = arith.constant 0xFF800000 : f32
    %50 = vector.broadcast %cst_18 : f32 to vector<16x256xf32>
    %51 = arith.select %49, %50, %8 : vector<16x256xi1>, vector<16x256xf32>
    %cst_19 = arith.constant dense<0xFF800000> : vector<16xf32>
    %52 = vector.multi_reduction <maximumf>, %47, %cst_19 [1] : vector<16x128xf32> to vector<16xf32>
    %53 = vector.shape_cast %52 : vector<16xf32> to vector<16x1xf32>
    %cst_20 = arith.constant dense<0xFF800000> : vector<16xf32>
    %54 = vector.multi_reduction <maximumf>, %51, %cst_20 [1] : vector<16x256xf32> to vector<16xf32>
    %55 = vector.shape_cast %54 : vector<16xf32> to vector<16x1xf32>
    %56 = arith.maximumf %53, %55 : vector<16x1xf32>
    %57 = vector.broadcast %56 : vector<16x1xf32> to vector<16x128xf32>
    %58 = arith.cmpf oeq, %47, %57 : vector<16x128xf32>
    %c1073741824_i32_21 = arith.constant 1073741824 : i32
    %59 = vector.broadcast %c1073741824_i32_21 : i32 to vector<16x128xi32>
    %60 = arith.select %58, %14, %59 : vector<16x128xi1>, vector<16x128xi32>
    %cst_22 = arith.constant dense<2147483647> : vector<16xi32>
    %61 = vector.multi_reduction <minsi>, %60, %cst_22 [1] : vector<16x128xi32> to vector<16xi32>
    %62 = vector.shape_cast %61 : vector<16xi32> to vector<16x1xi32>
    %63 = vector.broadcast %56 : vector<16x1xf32> to vector<16x256xf32>
    %64 = arith.cmpf oeq, %51, %63 : vector<16x256xf32>
    %c1073741824_i32_23 = arith.constant 1073741824 : i32
    %65 = vector.broadcast %c1073741824_i32_23 : i32 to vector<16x256xi32>
    %66 = arith.select %64, %12, %65 : vector<16x256xi1>, vector<16x256xi32>
    %cst_24 = arith.constant dense<2147483647> : vector<16xi32>
    %67 = vector.multi_reduction <minsi>, %66, %cst_24 [1] : vector<16x256xi32> to vector<16xi32>
    %68 = vector.shape_cast %67 : vector<16xi32> to vector<16x1xi32>
    %69 = arith.minsi %62, %68 : vector<16x1xi32>
    %c1_i32 = arith.constant 1 : i32
    %70 = vector.broadcast %c1_i32 : i32 to vector<16x128xi32>
    %71 = arith.cmpi eq, %15, %70 : vector<16x128xi32>
    %72 = vector.shape_cast %56 : vector<16x1xf32> to vector<16x1xf32>
    %73 = vector.broadcast %72 : vector<16x1xf32> to vector<16x128xf32>
    %74 = arith.select %71, %73, %38 : vector<16x128xi1>, vector<16x128xf32>
    %c1_i32_25 = arith.constant 1 : i32
    %75 = vector.broadcast %c1_i32_25 : i32 to vector<16x128xi32>
    %76 = arith.cmpi eq, %15, %75 : vector<16x128xi32>
    %77 = vector.shape_cast %69 : vector<16x1xi32> to vector<16x1xi32>
    %78 = vector.broadcast %77 : vector<16x1xi32> to vector<16x128xi32>
    %79 = arith.select %76, %78, %43 : vector<16x128xi1>, vector<16x128xi32>
    %80 = vector.broadcast %69 : vector<16x1xi32> to vector<16x128xi32>
    %81 = arith.cmpi eq, %14, %80 : vector<16x128xi32>
    %cst_26 = arith.constant 0xFF800000 : f32
    %82 = vector.broadcast %cst_26 : f32 to vector<16x128xf32>
    %83 = arith.select %81, %82, %47 : vector<16x128xi1>, vector<16x128xf32>
    %84 = vector.broadcast %69 : vector<16x1xi32> to vector<16x256xi32>
    %85 = arith.cmpi eq, %12, %84 : vector<16x256xi32>
    %cst_27 = arith.constant 0xFF800000 : f32
    %86 = vector.broadcast %cst_27 : f32 to vector<16x256xf32>
    %87 = arith.select %85, %86, %51 : vector<16x256xi1>, vector<16x256xf32>
    %cst_28 = arith.constant dense<0xFF800000> : vector<16xf32>
    %88 = vector.multi_reduction <maximumf>, %83, %cst_28 [1] : vector<16x128xf32> to vector<16xf32>
    %89 = vector.shape_cast %88 : vector<16xf32> to vector<16x1xf32>
    %cst_29 = arith.constant dense<0xFF800000> : vector<16xf32>
    %90 = vector.multi_reduction <maximumf>, %87, %cst_29 [1] : vector<16x256xf32> to vector<16xf32>
    %91 = vector.shape_cast %90 : vector<16xf32> to vector<16x1xf32>
    %92 = arith.maximumf %89, %91 : vector<16x1xf32>
    %93 = vector.broadcast %92 : vector<16x1xf32> to vector<16x128xf32>
    %94 = arith.cmpf oeq, %83, %93 : vector<16x128xf32>
    %c1073741824_i32_30 = arith.constant 1073741824 : i32
    %95 = vector.broadcast %c1073741824_i32_30 : i32 to vector<16x128xi32>
    %96 = arith.select %94, %14, %95 : vector<16x128xi1>, vector<16x128xi32>
    %cst_31 = arith.constant dense<2147483647> : vector<16xi32>
    %97 = vector.multi_reduction <minsi>, %96, %cst_31 [1] : vector<16x128xi32> to vector<16xi32>
    %98 = vector.shape_cast %97 : vector<16xi32> to vector<16x1xi32>
    %99 = vector.broadcast %92 : vector<16x1xf32> to vector<16x256xf32>
    %100 = arith.cmpf oeq, %87, %99 : vector<16x256xf32>
    %c1073741824_i32_32 = arith.constant 1073741824 : i32
    %101 = vector.broadcast %c1073741824_i32_32 : i32 to vector<16x256xi32>
    %102 = arith.select %100, %12, %101 : vector<16x256xi1>, vector<16x256xi32>
    %cst_33 = arith.constant dense<2147483647> : vector<16xi32>
    %103 = vector.multi_reduction <minsi>, %102, %cst_33 [1] : vector<16x256xi32> to vector<16xi32>
    %104 = vector.shape_cast %103 : vector<16xi32> to vector<16x1xi32>
    %105 = arith.minsi %98, %104 : vector<16x1xi32>
    %c2_i32 = arith.constant 2 : i32
    %106 = vector.broadcast %c2_i32 : i32 to vector<16x128xi32>
    %107 = arith.cmpi eq, %15, %106 : vector<16x128xi32>
    %108 = vector.shape_cast %92 : vector<16x1xf32> to vector<16x1xf32>
    %109 = vector.broadcast %108 : vector<16x1xf32> to vector<16x128xf32>
    %110 = arith.select %107, %109, %74 : vector<16x128xi1>, vector<16x128xf32>
    %c2_i32_34 = arith.constant 2 : i32
    %111 = vector.broadcast %c2_i32_34 : i32 to vector<16x128xi32>
    %112 = arith.cmpi eq, %15, %111 : vector<16x128xi32>
    %113 = vector.shape_cast %105 : vector<16x1xi32> to vector<16x1xi32>
    %114 = vector.broadcast %113 : vector<16x1xi32> to vector<16x128xi32>
    %115 = arith.select %112, %114, %79 : vector<16x128xi1>, vector<16x128xi32>
    %116 = vector.broadcast %105 : vector<16x1xi32> to vector<16x128xi32>
    %117 = arith.cmpi eq, %14, %116 : vector<16x128xi32>
    %cst_35 = arith.constant 0xFF800000 : f32
    %118 = vector.broadcast %cst_35 : f32 to vector<16x128xf32>
    %119 = arith.select %117, %118, %83 : vector<16x128xi1>, vector<16x128xf32>
    %120 = vector.broadcast %105 : vector<16x1xi32> to vector<16x256xi32>
    %121 = arith.cmpi eq, %12, %120 : vector<16x256xi32>
    %cst_36 = arith.constant 0xFF800000 : f32
    %122 = vector.broadcast %cst_36 : f32 to vector<16x256xf32>
    %123 = arith.select %121, %122, %87 : vector<16x256xi1>, vector<16x256xf32>
    %cst_37 = arith.constant dense<0xFF800000> : vector<16xf32>
    %124 = vector.multi_reduction <maximumf>, %119, %cst_37 [1] : vector<16x128xf32> to vector<16xf32>
    %125 = vector.shape_cast %124 : vector<16xf32> to vector<16x1xf32>
    %cst_38 = arith.constant dense<0xFF800000> : vector<16xf32>
    %126 = vector.multi_reduction <maximumf>, %123, %cst_38 [1] : vector<16x256xf32> to vector<16xf32>
    %127 = vector.shape_cast %126 : vector<16xf32> to vector<16x1xf32>
    %128 = arith.maximumf %125, %127 : vector<16x1xf32>
    %129 = vector.broadcast %128 : vector<16x1xf32> to vector<16x128xf32>
    %130 = arith.cmpf oeq, %119, %129 : vector<16x128xf32>
    %c1073741824_i32_39 = arith.constant 1073741824 : i32
    %131 = vector.broadcast %c1073741824_i32_39 : i32 to vector<16x128xi32>
    %132 = arith.select %130, %14, %131 : vector<16x128xi1>, vector<16x128xi32>
    %cst_40 = arith.constant dense<2147483647> : vector<16xi32>
    %133 = vector.multi_reduction <minsi>, %132, %cst_40 [1] : vector<16x128xi32> to vector<16xi32>
    %134 = vector.shape_cast %133 : vector<16xi32> to vector<16x1xi32>
    %135 = vector.broadcast %128 : vector<16x1xf32> to vector<16x256xf32>
    %136 = arith.cmpf oeq, %123, %135 : vector<16x256xf32>
    %c1073741824_i32_41 = arith.constant 1073741824 : i32
    %137 = vector.broadcast %c1073741824_i32_41 : i32 to vector<16x256xi32>
    %138 = arith.select %136, %12, %137 : vector<16x256xi1>, vector<16x256xi32>
    %cst_42 = arith.constant dense<2147483647> : vector<16xi32>
    %139 = vector.multi_reduction <minsi>, %138, %cst_42 [1] : vector<16x256xi32> to vector<16xi32>
    %140 = vector.shape_cast %139 : vector<16xi32> to vector<16x1xi32>
    %141 = arith.minsi %134, %140 : vector<16x1xi32>
    %c3_i32 = arith.constant 3 : i32
    %142 = vector.broadcast %c3_i32 : i32 to vector<16x128xi32>
    %143 = arith.cmpi eq, %15, %142 : vector<16x128xi32>
    %144 = vector.shape_cast %128 : vector<16x1xf32> to vector<16x1xf32>
    %145 = vector.broadcast %144 : vector<16x1xf32> to vector<16x128xf32>
    %146 = arith.select %143, %145, %110 : vector<16x128xi1>, vector<16x128xf32>
    %c3_i32_43 = arith.constant 3 : i32
    %147 = vector.broadcast %c3_i32_43 : i32 to vector<16x128xi32>
    %148 = arith.cmpi eq, %15, %147 : vector<16x128xi32>
    %149 = vector.shape_cast %141 : vector<16x1xi32> to vector<16x1xi32>
    %150 = vector.broadcast %149 : vector<16x1xi32> to vector<16x128xi32>
    %151 = arith.select %148, %150, %115 : vector<16x128xi1>, vector<16x128xi32>
    %c0_44 = arith.constant 0 : index
    %c0_45 = arith.constant 0 : index
    %152 = vector.load %arg5[%c0_44, %c0_45] : memref<16x128xf32, #tpu.memory_space<vmem>>, vector<16x128xf32>
    tpu.vector_store %arg5[%c0_44, %c0_45], %146 {strides = array<i32>} : memref<16x128xf32, #tpu.memory_space<vmem>>, vector<16x128xf32>,
    %c0_46 = arith.constant 0 : index
    %c0_47 = arith.constant 0 : index
    %153 = vector.load %arg6[%c0_46, %c0_47] : memref<16x128xi32, #tpu.memory_space<vmem>>, vector<16x128xi32>
    tpu.vector_store %arg6[%c0_46, %c0_47], %151 {strides = array<i32>} : memref<16x128xi32, #tpu.memory_space<vmem>>, vector<16x128xi32>,
    return
  }
  func.func @transform_0(%arg0: i32, %arg1: i32) -> (i32, i32) {
    %c0_i32 = arith.constant 0 : i32
    %c0_i32_0 = arith.constant 0 : i32
    return %arg0, %c0_i32 : i32, i32
  }
  func.func @transform_1(%arg0: i32, %arg1: i32) -> (i32, i32) {
    %c0_i32 = arith.constant 0 : i32
    %c0_i32_0 = arith.constant 0 : i32
    return %c0_i32, %arg1 : i32, i32
  }
  func.func @transform_2(%arg0: i32, %arg1: i32) -> (i32, i32) {
    %c0_i32 = arith.constant 0 : i32
    %c0_i32_0 = arith.constant 0 : i32
    return %c0_i32, %arg1 : i32, i32
  }
  func.func @transform_3(%arg0: i32, %arg1: i32) -> (i32, i32) {
    %c0_i32 = arith.constant 0 : i32
    %c0_i32_0 = arith.constant 0 : i32
    return %arg0, %c0_i32 : i32, i32
  }
  func.func @transform_4(%arg0: i32, %arg1: i32) -> (i32, i32) {
    %c0_i32 = arith.constant 0 : i32
    %c0_i32_0 = arith.constant 0 : i32
    return %arg0, %c0_i32 : i32, i32
  }
}

</mosaic_0001>

<llo_original>
// kernel: tpu_custom_call.1
$region0: #{tpu_custom_call.1}
  #allocation0 [shape = 'u32[]', space=smem, size = 0x4, offset = 0x4, fixed_abs, tag = 'smem constant byte address 0x4 - core index']
  #allocation1 [shape = 'u32[144,128]{1,0:T(1,128)}', space=vmem, size = 0x12000, scoped, tag = 'internal scratch']
  %s0 = inlined_call_operand.hbm [shape: bf16[32,128], index: 0, kind: input, shape index: {}]
  %s1 = inlined_call_operand.hbm [shape: bf16[128,512], index: 1, kind: input, shape index: {}]
  %s2 = inlined_call_operand.vmem [shape: f32[1,512], index: 2, kind: input, shape index: {}]
  %s3 = inlined_call_operand.hbm [shape: f32[32,128], index: 3, kind: output, shape index: {0}]
  %s4 = inlined_call_operand.hbm [shape: s32[32,128], index: 4, kind: output, shape index: {1}]
  %5 = xla_tuple %s3, %s4
  %s6 = sld [smem:[#allocation0]]
  $region65: #{tpu_custom_call.1} parent=0
    _
  %s8 = ssub.s32 1, %s6
  %s9 = scalar_select 0, %s8, %s6
  $region1: #{tpu_custom_call.1} parent=0
    #allocation2 [shape = 'u8[8192]{0}', space=vmem, size = 0x2000, scoped, tag = 'input window, operand 0']
    #allocation3 [shape = 's32[2]{0}', space=sflag, size = 0x8, scoped, tag = 'scoped memory for tpu_custom_call.1']
    #allocation4 [shape = 's32[2]{0}', space=sflag, size = 0x8, scoped, tag = 'scoped memory for tpu_custom_call.1']
    #allocation5 [shape = 'u8[131072]{0}', space=vmem, size = 0x20000, scoped, tag = 'input window, operand 1']
    #allocation6 [shape = 's32[2]{0}', space=sflag, size = 0x8, scoped, tag = 'scoped memory for tpu_custom_call.1']
    #allocation7 [shape = 'u8[16384]{0}', space=vmem, size = 0x4000, scoped, tag = 'output window, operand 0']
    #allocation8 [shape = 'u8[16384]{0}', space=vmem, size = 0x4000, scoped, tag = 'output window, operand 1']
    #allocation9 [shape = 's32[2]{0}', space=sflag, size = 0x8, scoped, tag = 'scoped memory for tpu_custom_call.1']
    %10 = vsyncpa [#allocation3], 0
    %s11 = scalar_lea.sflag [#allocation3], 1
    %12 = vsyncpa %s11, 0
    %13 = vsyncpa [#allocation6], 0
    %s14 = scalar_lea.sflag [#allocation6], 1
    %15 = vsyncpa %s14, 0
    %16 = vsyncpa [#allocation4], 0
    %s17 = scalar_lea.sflag [#allocation4], 1
    %18 = vsyncpa %s17, 0
    %19 = vsyncpa [#allocation9], 0
    %s20 = scalar_lea.sflag [#allocation9], 1
    %21 = vsyncpa %s20, 0
    loop: start=0, step=1, limit=6
    $region2: #{tpu_custom_call.1} parent=1 // loop_pre_header
      _
    $region3: #{tpu_custom_call.1} parent=1 // loop_header
      %s23 = sphi 0, %s27
      %p24 = scmp.ge.s32.totalorder %s23, 6
      %s30 = sphi 0, %s42
      %s31 = sphi 0, %s38
      %s32 = sphi 0, %s30
      %s33 = sphi 0, %s31
      %s34 = sphi 0, %s32
      %s35 = sphi 0, %s33
      %s45 = sphi 0, %s47
      %s48 = sphi 0, %s45
      %s49 = sphi 0, %s48
      %s65 = sphi 0, %s49
      %s71 = sphi 0, %s73
      %s74 = sphi 0, %s71
      %s75 = sphi 0, %s74
      %s91 = sphi 0, %s75
      %s97 = sphi 0, %s99
      %s100 = sphi 0, %s97
      %s101 = sphi 0, %s100
      %s117 = sphi 0, %s101
      %s123 = sphi 0, %s125
      %s126 = sphi 0, %s123
      %s127 = sphi 0, %s126
      %s143 = sphi 0, %s127
      %s149 = sphi 0, %s151
      %s152 = sphi 0, %s149
      %s153 = sphi 0, %s152
      %s169 = sphi 0, %s153
    $region4: #{tpu_custom_call.1} parent=1 // loop_header_branch
      %26 = sbr.rel (%p24) target = $region8
    $region5: #{tpu_custom_call.1} parent=1 // loop_body
      %s28 = ssub.s32 %s23, 1
      %s29 = ssub.s32 %s23, 2
      %s36 = sadd.s32 1, %s31
      %p37 = scmp.ge.s32.totalorder %s36, 2
      %s38 = scalar_select %p37, 0, %s36
      %s39 = sadd.s32 1, %s30
      %s40 = scalar_select %p37, %s39, %s30
      %p41 = scmp.ge.s32.totalorder %s40, 2
      %s42 = scalar_select %p41, 0, %s40
      %s43 = ssub.s32 %s30, %s42
      %p44 = scmp.eq.s32.totalorder %s43, 0
      %s46 = sadd.s32 %s45, 1
      %s47 = scalar_select %p44, %s45, %s46
      %p50 = pneg %p44
      %p51 = scmp.eq.s32.totalorder %s23, 3
      %p52 = por %p50, %p51
      %p53 = scmp.ne.s32.totalorder %s45, %s48
      %p54 = scmp.eq.s32.totalorder %s23, 0
      %p55 = por %p53, %p54
      %p56 = scmp.ne.s32.totalorder %s45, %s48
      %p57 = scmp.eq.s32.totalorder %s28, 3
      %p58 = por %p56, %p57
      %p59 = scmp.ne.s32.totalorder %s48, %s49
      %p60 = scmp.eq.s32.totalorder %s28, 0
      %p61 = por %p59, %p60
      %p62 = scmp.ne.s32.totalorder %s48, %s49
      %p63 = scmp.eq.s32.totalorder %s29, 3
      %p64 = por %p62, %p63
      %p66 = scmp.ne.s32.totalorder %s49, %s65
      %p67 = scmp.eq.s32.totalorder %s29, 0
      %p68 = por %p66, %p67
      %s69 = ssub.s32 %s31, %s38
      %p70 = scmp.eq.s32.totalorder %s69, 0
      %s72 = sadd.s32 %s71, 1
      %s73 = scalar_select %p70, %s71, %s72
      %p76 = pneg %p70
      %p77 = scmp.eq.s32.totalorder %s23, 3
      %p78 = por %p76, %p77
      %p79 = scmp.ne.s32.totalorder %s71, %s74
      %p80 = scmp.eq.s32.totalorder %s23, 0
      %p81 = por %p79, %p80
      %p82 = scmp.ne.s32.totalorder %s71, %s74
      %p83 = scmp.eq.s32.totalorder %s28, 3
      %p84 = por %p82, %p83
      %p85 = scmp.ne.s32.totalorder %s74, %s75
      %p86 = scmp.eq.s32.totalorder %s28, 0
      %p87 = por %p85, %p86
      %p88 = scmp.ne.s32.totalorder %s74, %s75
      %p89 = scmp.eq.s32.totalorder %s29, 3
      %p90 = por %p88, %p89
      %p92 = scmp.ne.s32.totalorder %s75, %s91
      %p93 = scmp.eq.s32.totalorder %s29, 0
      %p94 = por %p92, %p93
      %s95 = ssub.s32 %s31, %s38
      %p96 = scmp.eq.s32.totalorder %s95, 0
      %s98 = sadd.s32 %s97, 1
      %s99 = scalar_select %p96, %s97, %s98
      %p102 = pneg %p96
      %p103 = scmp.eq.s32.totalorder %s23, 3
      %p104 = por %p102, %p103
      %p105 = scmp.ne.s32.totalorder %s97, %s100
      %p106 = scmp.eq.s32.totalorder %s23, 0
      %p107 = por %p105, %p106
      %p108 = scmp.ne.s32.totalorder %s97, %s100
      %p109 = scmp.eq.s32.totalorder %s28, 3
      %p110 = por %p108, %p109
      %p111 = scmp.ne.s32.totalorder %s100, %s101
      %p112 = scmp.eq.s32.totalorder %s28, 0
      %p113 = por %p111, %p112
      %p114 = scmp.ne.s32.totalorder %s100, %s101
      %p115 = scmp.eq.s32.totalorder %s29, 3
      %p116 = por %p114, %p115
      %p118 = scmp.ne.s32.totalorder %s101, %s117
      %p119 = scmp.eq.s32.totalorder %s29, 0
      %p120 = por %p118, %p119
      %s121 = ssub.s32 %s30, %s42
      %p122 = scmp.eq.s32.totalorder %s121, 0
      %s124 = sadd.s32 %s123, 1
      %s125 = scalar_select %p122, %s123, %s124
      %p128 = pneg %p122
      %p129 = scmp.eq.s32.totalorder %s23, 3
      %p130 = por %p128, %p129
      %p131 = scmp.ne.s32.totalorder %s123, %s126
      %p132 = scmp.eq.s32.totalorder %s23, 0
      %p133 = por %p131, %p132
      %p134 = scmp.ne.s32.totalorder %s123, %s126
      %p135 = scmp.eq.s32.totalorder %s28, 3
      %p136 = por %p134, %p135
      %p137 = scmp.ne.s32.totalorder %s126, %s127
      %p138 = scmp.eq.s32.totalorder %s28, 0
      %p139 = por %p137, %p138
      %p140 = scmp.ne.s32.totalorder %s126, %s127
      %p141 = scmp.eq.s32.totalorder %s29, 3
      %p142 = por %p140, %p141
      %p144 = scmp.ne.s32.totalorder %s127, %s143
      %p145 = scmp.eq.s32.totalorder %s29, 0
      %p146 = por %p144, %p145
      %s147 = ssub.s32 %s30, %s42
      %p148 = scmp.eq.s32.totalorder %s147, 0
      %s150 = sadd.s32 %s149, 1
      %s151 = scalar_select %p148, %s149, %s150
      %p154 = pneg %p148
      %p155 = scmp.eq.s32.totalorder %s23, 3
      %p156 = por %p154, %p155
      %p157 = scmp.ne.s32.totalorder %s149, %s152
      %p158 = scmp.eq.s32.totalorder %s23, 0
      %p159 = por %p157, %p158
      %p160 = scmp.ne.s32.totalorder %s149, %s152
      %p161 = scmp.eq.s32.totalorder %s28, 3
      %p162 = por %p160, %p161
      %p163 = scmp.ne.s32.totalorder %s152, %s153
      %p164 = scmp.eq.s32.totalorder %s28, 0
      %p165 = por %p163, %p164
      %p166 = scmp.ne.s32.totalorder %s152, %s153
      %p167 = scmp.eq.s32.totalorder %s29, 3
      %p168 = por %p166, %p167
      %p170 = scmp.ne.s32.totalorder %s153, %s169
      %p171 = scmp.eq.s32.totalorder %s29, 0
      %p172 = por %p170, %p171
      %p173 = scmp.le.s32.totalorder 1, %s23
      %p174 = scmp.lt.s32.totalorder %s23, 5
      %p175 = pnand %p173, %p174
      %p176 = pneg %p175
      // Predicated region
      $region9: #{tpu_custom_call.1} parent=5 // pred_check
        _
      $region10: #{tpu_custom_call.1} parent=5 // pred_check_branch
        %178 = sbr.rel (%p175) target = $region12
      $region11: #{tpu_custom_call.1} parent=5 // pred_region
        %s179 = ssub.s32 %s23, 1
      $region12: #{tpu_custom_call.1} parent=5 // pred_fallthru
        _
      %p180 = scmp.lt.s32.totalorder %s23, 4
      // Predicated region
      $region13: #{tpu_custom_call.1} parent=5 // pred_check
        %p181 = pneg %p180
      $region14: #{tpu_custom_call.1} parent=5 // pred_check_branch
        %183 = sbr.rel (%p181) target = $region16
      $region15: #{tpu_custom_call.1} parent=5 // pred_region
        // Predicated region
        $region17: #{tpu_custom_call.1} parent=15 // pred_check
          %p184 = pneg %p55
        $region18: #{tpu_custom_call.1} parent=15 // pred_check_branch
          %186 = sbr.rel (%p184) target = $region20
        $region19: #{tpu_custom_call.1} parent=15 // pred_region
          %s187 = sand.u32 %s45, 1
          %s188 = scalar_lea.sflag [#allocation3], %s187
          %s189 = sand.u32 %s45, 1
          %s190 = smul.addr %s189, 8
          %s191 = scalar_lea.vmem [#allocation2], %s190
          %s192 = smul.u32 2, %s30
          %s194 = ssub.s32 128, 128
          %195 = vsyncadd %s188, %s194
          %s196 = smul.addr %s192, 64
          %s197 = scalar_lea.hbm %s0, %s196
          %s198 = sshll.u32 %s191, 4
          %s199 = int_to_ptr.vmem [resolvable:$true] %s198
          %204 = dma.hbm_to_vmem [thread:$0]  %s197, 128, %s199, %s188, 64, 64, 4
        $region20: #{tpu_custom_call.1} parent=15 // pred_fallthru
          _
        // Predicated region
        $region21: #{tpu_custom_call.1} parent=15 // pred_check
          %p205 = pneg %p81
        $region22: #{tpu_custom_call.1} parent=15 // pred_check_branch
          %207 = sbr.rel (%p205) target = $region24
        $region23: #{tpu_custom_call.1} parent=15 // pred_region
          %s208 = sand.u32 %s71, 1
          %s209 = scalar_lea.sflag [#allocation6], %s208
          %s210 = sand.u32 %s71, 1
          %s211 = smul.addr %s210, 128
          %s212 = scalar_lea.vmem [#allocation5], %s211
          %s213 = smul.u32 2, %s31
          %s215 = ssub.s32 2048, 2048
          %216 = vsyncadd %s209, %s215
          %s217 = smul.addr %s213, 64
          %s218 = scalar_lea.hbm %s1, %s217
          %s219 = sshll.u32 %s212, 4
          %s220 = int_to_ptr.vmem [resolvable:$true] %s219
          %225 = dma.hbm_to_vmem [thread:$0]  %s218, 2048, %s220, %s209, 256, 128, 8
        $region24: #{tpu_custom_call.1} parent=15 // pred_fallthru
          _
        // Predicated region
        $region25: #{tpu_custom_call.1} parent=15 // pred_check
          %p226 = pneg %p107
        $region26: #{tpu_custom_call.1} parent=15 // pred_check_branch
          %228 = sbr.rel (%p226) target = $region28
        $region27: #{tpu_custom_call.1} parent=15 // pred_region
          %s229 = smul.u32 2, %s31
          %p230 = scmp.lt.s32.totalorder %s229, 3
          %s231 = scalar_select %p230, %s229, 3
          %s232 = scalar_lea.vmem %s2, %s231
          %s233 = smul.u32 2, %s31
        $region28: #{tpu_custom_call.1} parent=15 // pred_fallthru
          _
      $region16: #{tpu_custom_call.1} parent=5 // pred_fallthru
        _
      %p234 = scmp.le.s32.totalorder 1, %s23
      %p235 = scmp.lt.s32.totalorder %s23, 5
      %p236 = pnand %p234, %p235
      %p237 = pneg %p236
      // Predicated region
      $region29: #{tpu_custom_call.1} parent=5 // pred_check
        _
      $region30: #{tpu_custom_call.1} parent=5 // pred_check_branch
        %239 = sbr.rel (%p236) target = $region32
      $region31: #{tpu_custom_call.1} parent=5 // pred_region
        %s240 = ssub.s32 %s23, 1
        %s241 = sand.u32 %s48, 1
        %s242 = scalar_lea.sflag [#allocation3], %s241
        %s243 = sand.u32 %s48, 1
        %s244 = smul.addr %s243, 8
        %s245 = scalar_lea.vmem [#allocation2], %s244
        // Predicated region
        $region33: #{tpu_custom_call.1} parent=31 // pred_check
          %p246 = pneg %p61
        $region34: #{tpu_custom_call.1} parent=31 // pred_check_branch
          %248 = sbr.rel (%p246) target = $region36
        $region35: #{tpu_custom_call.1} parent=31 // pred_region
          %249 = dma.done %s242, 128
        $region36: #{tpu_custom_call.1} parent=31 // pred_fallthru
          _
        %s250 = sand.u32 %s74, 1
        %s251 = scalar_lea.sflag [#allocation6], %s250
        %s252 = sand.u32 %s74, 1
        %s253 = smul.addr %s252, 128
        %s254 = scalar_lea.vmem [#allocation5], %s253
        // Predicated region
        $region37: #{tpu_custom_call.1} parent=31 // pred_check
          %p255 = pneg %p87
        $region38: #{tpu_custom_call.1} parent=31 // pred_check_branch
          %257 = sbr.rel (%p255) target = $region40
        $region39: #{tpu_custom_call.1} parent=31 // pred_region
          %258 = dma.done %s251, 2048
        $region40: #{tpu_custom_call.1} parent=31 // pred_fallthru
          _
        %s259 = sand.u32 %s48, 1
        %s260 = scalar_lea.sflag [#allocation3], %s259
        %s261 = sand.u32 %s48, 1
        %s262 = smul.addr %s261, 8
        %s263 = scalar_lea.vmem [#allocation2], %s262
        %p264 = pneg %p61
        %p265 = pneg %p58
        %s266 = sand.u32 %s74, 1
        %s267 = scalar_lea.sflag [#allocation6], %s266
        %s268 = sand.u32 %s74, 1
        %s269 = smul.addr %s268, 128
        %s270 = scalar_lea.vmem [#allocation5], %s269
        %p271 = pneg %p87
        %p272 = pneg %p84
        %s273 = smul.u32 2, %s33
        %p274 = scmp.lt.s32.totalorder %s273, 3
        %s275 = scalar_select %p274, %s273, 3
        %s276 = scalar_lea.vmem %s2, %s275
        %p277 = pneg %p113
        %p278 = pneg %p110
        %p279 = pneg %p139
        %p280 = pneg %p136
        %s281 = sand.u32 %s126, 1
        %s282 = scalar_lea.sflag [#allocation4], %s281
        %s283 = sand.u32 %s126, 1
        %s284 = smul.addr %s283, 16
        %s285 = scalar_lea.vmem [#allocation7], %s284
        %p286 = pneg %p165
        %p287 = pneg %p162
        %s288 = sand.u32 %s152, 1
        %s289 = scalar_lea.sflag [#allocation9], %s288
        %s290 = sand.u32 %s152, 1
        %s291 = smul.addr %s290, 16
        %s292 = scalar_lea.vmem [#allocation8], %s291
        %s293 = smul.u32 2, %s32
        %s294 = smul.u32 2, %s33
        %s295 = smul.u32 2, %s33
        %p296 = scmp.lt.s32.totalorder %s295, 3
        %s297 = scalar_select %p296, %s295, 3
        %s298 = scalar_lea.vmem %s2, %s297
        %s299 = smul.u32 2, %s33
        %s300 = smul.u32 2, %s32
        %s301 = smul.u32 2, %s32
        %p303 = scmp.eq.s32.totalorder %s33, 0
        // Predicated region
        $region41: #{tpu_custom_call.1} parent=31 // pred_check
          %p304 = pneg %p303
        $region42: #{tpu_custom_call.1} parent=31 // pred_check_branch
          %306 = sbr.rel (%p304) target = $region44
        $region43: #{tpu_custom_call.1} parent=31 // pred_region
          %307 = vst [vmem:[%s285] sm:$0xff] -inf
          %308 = vst [vmem:[%s285 + $0x8] sm:$0xff] -inf
          %309 = vst [vmem:[%s292] sm:$0xff] 4294967295
          %310 = vst [vmem:[%s292 + $0x8] sm:$0xff] 4294967295
        $region44: #{tpu_custom_call.1} parent=31 // pred_fallthru
          _
        %v311 = vld [vmem:[%s245] sm:$0xf]
        %v312 = vld [vmem:[%s245 + $0x4] sm:$0xf]
        %v313 = vld [vmem:[%s254] sm:$0xff]
        %v314 = vld [vmem:[%s254 + $0x8] sm:$0xff]
        %v315 = vld [vmem:[%s254 + $0x10] sm:$0xff]
        %v316 = vld [vmem:[%s254 + $0x18] sm:$0xff]
        %v317 = vld [vmem:[%s254 + $0x20] sm:$0xff]
        %v318 = vld [vmem:[%s254 + $0x28] sm:$0xff]
        %v319 = vld [vmem:[%s254 + $0x30] sm:$0xff]
        %v320 = vld [vmem:[%s254 + $0x38] sm:$0xff]
        %v321 = vld [vmem:[%s254 + $0x40] sm:$0xff]
        %v322 = vld [vmem:[%s254 + $0x48] sm:$0xff]
        %v323 = vld [vmem:[%s254 + $0x50] sm:$0xff]
        %v324 = vld [vmem:[%s254 + $0x58] sm:$0xff]
        %v325 = vld [vmem:[%s254 + $0x60] sm:$0xff]
        %v326 = vld [vmem:[%s254 + $0x68] sm:$0xff]
        %v327 = vld [vmem:[%s254 + $0x70] sm:$0xff]
        %v328 = vld [vmem:[%s254 + $0x78] sm:$0xff]
        %v329 = vld [vmem:[%s298] sm:$0x3]
        %v331 = vlaneseq
        %v332 = vshrl.u32 %v331, 7
        %v333 = vsub.s32 0, %v332
        %v334 = vrot.slane %v329, %v333
        %v335 = vlaneseq
        %v336 = vshrl.u32 %v335, 7
        %v337 = vsub.s32 1, %v336
        %v338 = vrot.slane %v329, %v337
        %v343 = vunpack.c.l.b16 %v311
        %v344 = vunpack.c.l.b16 %v312
        %v345 = vpack.c.b16 %v344, %v343
        %v363 = vunpack.c.l.b16 %v313
        %v364 = vunpack.c.h.b16 %v313
        %v365 = vunpack.c.l.b16 %v314
        %v366 = vunpack.c.h.b16 %v314
        %v367 = vunpack.c.l.b16 %v315
        %v368 = vunpack.c.h.b16 %v315
        %v369 = vunpack.c.l.b16 %v316
        %v370 = vunpack.c.h.b16 %v316
        %v371 = vunpack.c.l.b16 %v317
        %v372 = vunpack.c.h.b16 %v317
        %v373 = vunpack.c.l.b16 %v318
        %v374 = vunpack.c.h.b16 %v318
        %v375 = vunpack.c.l.b16 %v319
        %v376 = vunpack.c.h.b16 %v319
        %v377 = vunpack.c.l.b16 %v320
        %v378 = vunpack.c.h.b16 %v320
        %v379 = vunpack.c.l.b16 %v321
        %v380 = vunpack.c.h.b16 %v321
        %v381 = vunpack.c.l.b16 %v322
        %v382 = vunpack.c.h.b16 %v322
        %v383 = vunpack.c.l.b16 %v323
        %v384 = vunpack.c.h.b16 %v323
        %v385 = vunpack.c.l.b16 %v324
        %v386 = vunpack.c.h.b16 %v324
        %v387 = vunpack.c.l.b16 %v325
        %v388 = vunpack.c.h.b16 %v325
        %v389 = vunpack.c.l.b16 %v326
        %v390 = vunpack.c.h.b16 %v326
        %v391 = vunpack.c.l.b16 %v327
        %v392 = vunpack.c.h.b16 %v327
        %v393 = vunpack.c.l.b16 %v328
        %v394 = vunpack.c.h.b16 %v328
        %v395 = vpack.c.b16 %v365, %v363
        %v396 = vpack.c.b16 %v366, %v364
        %v397 = vpack.c.b16 %v369, %v367
        %v398 = vpack.c.b16 %v370, %v368
        %v399 = vpack.c.b16 %v373, %v371
        %v400 = vpack.c.b16 %v374, %v372
        %v401 = vpack.c.b16 %v377, %v375
        %v402 = vpack.c.b16 %v378, %v376
        %v403 = vpack.c.b16 %v381, %v379
        %v404 = vpack.c.b16 %v382, %v380
        %v405 = vpack.c.b16 %v385, %v383
        %v406 = vpack.c.b16 %v386, %v384
        %v407 = vpack.c.b16 %v389, %v387
        %v408 = vpack.c.b16 %v390, %v388
        %v409 = vpack.c.b16 %v393, %v391
        %v410 = vpack.c.b16 %v394, %v392
        %427 = vmatprep.subr.bf16.mxu0 %v396
        %428 = vmatpush1.bf16.msra.mxu0 %v395
        %429 = vmatprep.subr.bf16.mxu0 %v398
        %430 = vmatpush1.bf16.msra.mxu0 %v397
        %431 = vmatprep.subr.bf16.mxu0 %v400
        %432 = vmatpush1.bf16.msra.mxu0 %v399
        %433 = vmatprep.subr.bf16.mxu0 %v402
        %434 = vmatpush1.bf16.msra.mxu0 %v401
        %435 = vmatprep.subr.bf16.mxu0 %v404
        %436 = vmatpush1.bf16.msra.mxu0 %v403
        %437 = vmatprep.subr.bf16.mxu0 %v406
        %438 = vmatpush1.bf16.msra.mxu0 %v405
        %439 = vmatprep.subr.bf16.mxu0 %v408
        %440 = vmatpush1.bf16.msra.mxu0 %v407
        %441 = vmatprep.subr.bf16.mxu0 %v410
        %442 = vmatpush1.bf16.msra.mxu0 %v409
        %443 = vmatprep.subr.bf16.mxu0 0
        %444 = vmatpush1.bf16.msra.mxu0 0
        %445 = vmatprep.subr.bf16.mxu0 0
        %446 = vmatpush1.bf16.msra.mxu0 0
        %447 = vmatprep.subr.bf16.mxu0 0
        %448 = vmatpush1.bf16.msra.mxu0 0
        %449 = vmatprep.subr.bf16.mxu0 0
        %450 = vmatpush1.bf16.msra.mxu0 0
        %451 = vmatprep.subr.bf16.mxu0 0
        %452 = vmatpush1.bf16.msra.mxu0 0
        %453 = vmatprep.subr.bf16.mxu0 0
        %454 = vmatpush1.bf16.msra.mxu0 0
        %455 = vmatprep.subr.bf16.mxu0 0
        %456 = vmatpush1.bf16.msra.mxu0 0
        %457 = vmatprep.subr.bf16.mxu0 0
        %458 = vmatpush1.bf16.msra.mxu0 0
        %459 = vmatprep.mubr.bf16.mxu0 0
        %460 = vmatmul.mubr.bf16.gmra.mrb[0].mxu0 %v345
        %v461 = vpop.f32.mrb[0].mxu0
        %v462 = vadd.f32 %v334, %v461
        %v463 = vpop.f32.mrb[0].mxu0
        %v464 = vadd.f32 %v338, %v463
        %v465 = vpop.f32.mrb[0].mxu0
        %v466 = vadd.f32 %v334, %v465
        %v467 = vpop.f32.mrb[0].mxu0
        %v468 = vadd.f32 %v338, %v467
        %469 = vdwg.mxu0
        %v470 = vlaneseq
        %v471 = vand.u32 %v470, 127
        %v472 = vadd.s32 %v471, 128
        %s473 = smul.u32 %s33, 256
        %v474 = vstv %s473
        %v475 = vadd.s32 %v471, %v474
        %v476 = vadd.s32 %v472, %v474
        %v477 = vld [vmem:[%s285] sm:$0xff]
        %v478 = vld [vmem:[%s285 + $0x8] sm:$0xff]
        %v479 = vld [vmem:[%s292] sm:$0xff]
        %v480 = vld [vmem:[%s292 + $0x8] sm:$0xff]
        %481 = vmax.xlane.f32.xlu0 %v477
        %v482 = vpop.xlane.xlu0 %481
        %483 = vmax.xlane.f32.xlu0 %v478
        %v484 = vpop.xlane.xlu0 %483
        %v485 = vmax.f32 %v462, %v464
        %486 = vmax.xlane.f32.xlu0 %v485
        %v487 = vpop.xlane.xlu0 %486
        %v488 = vmax.f32 %v466, %v468
        %489 = vmax.xlane.f32.xlu0 %v488
        %v490 = vpop.xlane.xlu0 %489
        %v491 = vmax.f32 %v482, %v487
        %v492 = vmax.f32 %v484, %v490
        %vm493 = vcmp.eq.f32.partialorder %v477, %v491
        %vm494 = vcmp.eq.f32.partialorder %v478, %v492
        %v495 = vsel %vm493, %v479, 1073741824
        %v496 = vsel %vm494, %v480, 1073741824
        %v497 = vand.u32 %v495, 65535
        %v498 = vshra.s32 %v495, 16
        %v499 = vcvt.s32.f32 %v497
        %v500 = vcvt.s32.f32 %v498
        %501 = vmin.xlane.f32.xlu0 %v500
        %v502 = vpop.xlane.xlu0 %501
        %vm503 = vcmp.eq.f32.partialorder %v500, %v502
        %v504 = vsel %vm503, %v499, inf
        %505 = vmin.xlane.f32.xlu0 %v504
        %v506 = vpop.xlane.xlu0 %505
        %v507 = vcvt.f32.s32 %v506
        %v508 = vcvt.f32.s32 %v502
        %v509 = vshll.u32 %v508, 16
        %v510 = vadd.s32 %v509, %v507
        %v511 = vand.u32 %v496, 65535
        %v512 = vshra.s32 %v496, 16
        %v513 = vcvt.s32.f32 %v511
        %v514 = vcvt.s32.f32 %v512
        %515 = vmin.xlane.f32.xlu0 %v514
        %v516 = vpop.xlane.xlu0 %515
        %vm517 = vcmp.eq.f32.partialorder %v514, %v516
        %v518 = vsel %vm517, %v513, inf
        %519 = vmin.xlane.f32.xlu0 %v518
        %v520 = vpop.xlane.xlu0 %519
        %v521 = vcvt.f32.s32 %v520
        %v522 = vcvt.f32.s32 %v516
        %v523 = vshll.u32 %v522, 16
        %v524 = vadd.s32 %v523, %v521
        %vm525 = vcmp.eq.f32.partialorder %v462, %v491
        %vm526 = vcmp.eq.f32.partialorder %v464, %v491
        %vm527 = vcmp.eq.f32.partialorder %v466, %v492
        %vm528 = vcmp.eq.f32.partialorder %v468, %v492
        %v529 = vsel %vm525, %v475, 1073741824
        %v530 = vsel %vm526, %v476, 1073741824
        %v531 = vsel %vm527, %v475, 1073741824
        %v532 = vsel %vm528, %v476, 1073741824
        %vm533 = vcmp.lt.s32.totalorder %v529, %v530
        %v534 = vsel %vm533, %v529, %v530
        %v535 = vand.u32 %v534, 65535
        %v536 = vshra.s32 %v534, 16
        %v537 = vcvt.s32.f32 %v535
        %v538 = vcvt.s32.f32 %v536
        %539 = vmin.xlane.f32.xlu0 %v538
        %v540 = vpop.xlane.xlu0 %539
        %vm541 = vcmp.eq.f32.partialorder %v538, %v540
        %v542 = vsel %vm541, %v537, inf
        %543 = vmin.xlane.f32.xlu0 %v542
        %v544 = vpop.xlane.xlu0 %543
        %v545 = vcvt.f32.s32 %v544
        %v546 = vcvt.f32.s32 %v540
        %v547 = vshll.u32 %v546, 16
        %v548 = vadd.s32 %v547, %v545
        %vm549 = vcmp.lt.s32.totalorder %v531, %v532
        %v550 = vsel %vm549, %v531, %v532
        %v551 = vand.u32 %v550, 65535
        %v552 = vshra.s32 %v550, 16
        %v553 = vcvt.s32.f32 %v551
        %v554 = vcvt.s32.f32 %v552
        %555 = vmin.xlane.f32.xlu0 %v554
        %v556 = vpop.xlane.xlu0 %555
        %vm557 = vcmp.eq.f32.partialorder %v554, %v556
        %v558 = vsel %vm557, %v553, inf
        %559 = vmin.xlane.f32.xlu0 %v558
        %v560 = vpop.xlane.xlu0 %559
        %v561 = vcvt.f32.s32 %v560
        %v562 = vcvt.f32.s32 %v556
        %v563 = vshll.u32 %v562, 16
        %v564 = vadd.s32 %v563, %v561
        %vm565 = vcmp.lt.s32.totalorder %v510, %v548
        %v566 = vsel %vm565, %v510, %v548
        %vm567 = vcmp.lt.s32.totalorder %v524, %v564
        %v568 = vsel %vm567, %v524, %v564
        %vm569 = vcmp.eq.s32.totalorder %v471, 0
        %v570 = vsel %vm569, %v491, %v477
        %v571 = vsel %vm569, %v492, %v478
        %v572 = vsel %vm569, %v566, %v479
        %v573 = vsel %vm569, %v568, %v480
        %vm574 = vcmp.eq.s32.totalorder %v479, %v566
        %vm575 = vcmp.eq.s32.totalorder %v480, %v568
        %v576 = vsel %vm574, -inf, %v477
        %v577 = vsel %vm575, -inf, %v478
        %vm578 = vcmp.eq.s32.totalorder %v475, %v566
        %vm579 = vcmp.eq.s32.totalorder %v476, %v566
        %vm580 = vcmp.eq.s32.totalorder %v475, %v568
        %vm581 = vcmp.eq.s32.totalorder %v476, %v568
        %v582 = vsel %vm578, -inf, %v462
        %v583 = vsel %vm579, -inf, %v464
        %v584 = vsel %vm580, -inf, %v466
        %v585 = vsel %vm581, -inf, %v468
        %586 = vmax.xlane.f32.xlu0 %v576
        %v587 = vpop.xlane.xlu0 %586
        %588 = vmax.xlane.f32.xlu0 %v577
        %v589 = vpop.xlane.xlu0 %588
        %v590 = vmax.f32 %v582, %v583
        %591 = vmax.xlane.f32.xlu0 %v590
        %v592 = vpop.xlane.xlu0 %591
        %v593 = vmax.f32 %v584, %v585
        %594 = vmax.xlane.f32.xlu0 %v593
        %v595 = vpop.xlane.xlu0 %594
        %v596 = vmax.f32 %v587, %v592
        %v597 = vmax.f32 %v589, %v595
        %vm598 = vcmp.eq.f32.partialorder %v576, %v596
        %vm599 = vcmp.eq.f32.partialorder %v577, %v597
        %v600 = vsel %vm598, %v479, 1073741824
        %v601 = vsel %vm599, %v480, 1073741824
        %v602 = vand.u32 %v600, 65535
        %v603 = vshra.s32 %v600, 16
        %v604 = vcvt.s32.f32 %v602
        %v605 = vcvt.s32.f32 %v603
        %606 = vmin.xlane.f32.xlu0 %v605
        %v607 = vpop.xlane.xlu0 %606
        %vm608 = vcmp.eq.f32.partialorder %v605, %v607
        %v609 = vsel %vm608, %v604, inf
        %610 = vmin.xlane.f32.xlu0 %v609
        %v611 = vpop.xlane.xlu0 %610
        %v612 = vcvt.f32.s32 %v611
        %v613 = vcvt.f32.s32 %v607
        %v614 = vshll.u32 %v613, 16
        %v615 = vadd.s32 %v614, %v612
        %v616 = vand.u32 %v601, 65535
        %v617 = vshra.s32 %v601, 16
        %v618 = vcvt.s32.f32 %v616
        %v619 = vcvt.s32.f32 %v617
        %620 = vmin.xlane.f32.xlu0 %v619
        %v621 = vpop.xlane.xlu0 %620
        %vm622 = vcmp.eq.f32.partialorder %v619, %v621
        %v623 = vsel %vm622, %v618, inf
        %624 = vmin.xlane.f32.xlu0 %v623
        %v625 = vpop.xlane.xlu0 %624
        %v626 = vcvt.f32.s32 %v625
        %v627 = vcvt.f32.s32 %v621
        %v628 = vshll.u32 %v627, 16
        %v629 = vadd.s32 %v628, %v626
        %vm630 = vcmp.eq.f32.partialorder %v582, %v596
        %vm631 = vcmp.eq.f32.partialorder %v583, %v596
        %vm632 = vcmp.eq.f32.partialorder %v584, %v597
        %vm633 = vcmp.eq.f32.partialorder %v585, %v597
        %v634 = vsel %vm630, %v475, 1073741824
        %v635 = vsel %vm631, %v476, 1073741824
        %v636 = vsel %vm632, %v475, 1073741824
        %v637 = vsel %vm633, %v476, 1073741824
        %vm638 = vcmp.lt.s32.totalorder %v634, %v635
        %v639 = vsel %vm638, %v634, %v635
        %v640 = vand.u32 %v639, 65535
        %v641 = vshra.s32 %v639, 16
        %v642 = vcvt.s32.f32 %v640
        %v643 = vcvt.s32.f32 %v641
        %644 = vmin.xlane.f32.xlu0 %v643
        %v645 = vpop.xlane.xlu0 %644
        %vm646 = vcmp.eq.f32.partialorder %v643, %v645
        %v647 = vsel %vm646, %v642, inf
        %648 = vmin.xlane.f32.xlu0 %v647
        %v649 = vpop.xlane.xlu0 %648
        %v650 = vcvt.f32.s32 %v649
        %v651 = vcvt.f32.s32 %v645
        %v652 = vshll.u32 %v651, 16
        %v653 = vadd.s32 %v652, %v650
        %vm654 = vcmp.lt.s32.totalorder %v636, %v637
        %v655 = vsel %vm654, %v636, %v637
        %v656 = vand.u32 %v655, 65535
        %v657 = vshra.s32 %v655, 16
        %v658 = vcvt.s32.f32 %v656
        %v659 = vcvt.s32.f32 %v657
        %660 = vmin.xlane.f32.xlu0 %v659
        %v661 = vpop.xlane.xlu0 %660
        %vm662 = vcmp.eq.f32.partialorder %v659, %v661
        %v663 = vsel %vm662, %v658, inf
        %664 = vmin.xlane.f32.xlu0 %v663
        %v665 = vpop.xlane.xlu0 %664
        %v666 = vcvt.f32.s32 %v665
        %v667 = vcvt.f32.s32 %v661
        %v668 = vshll.u32 %v667, 16
        %v669 = vadd.s32 %v668, %v666
        %vm670 = vcmp.lt.s32.totalorder %v615, %v653
        %v671 = vsel %vm670, %v615, %v653
        %vm672 = vcmp.lt.s32.totalorder %v629, %v669
        %v673 = vsel %vm672, %v629, %v669
        %vm674 = vcmp.eq.s32.totalorder %v471, 1
        %v675 = vsel %vm674, %v596, %v570
        %v676 = vsel %vm674, %v597, %v571
        %v677 = vsel %vm674, %v671, %v572
        %v678 = vsel %vm674, %v673, %v573
        %vm679 = vcmp.eq.s32.totalorder %v479, %v671
        %vm680 = vcmp.eq.s32.totalorder %v480, %v673
        %v681 = vsel %vm679, -inf, %v576
        %v682 = vsel %vm680, -inf, %v577
        %vm683 = vcmp.eq.s32.totalorder %v475, %v671
        %vm684 = vcmp.eq.s32.totalorder %v476, %v671
        %vm685 = vcmp.eq.s32.totalorder %v475, %v673
        %vm686 = vcmp.eq.s32.totalorder %v476, %v673
        %v687 = vsel %vm683, -inf, %v582
        %v688 = vsel %vm684, -inf, %v583
        %v689 = vsel %vm685, -inf, %v584
        %v690 = vsel %vm686, -inf, %v585
        %691 = vmax.xlane.f32.xlu0 %v681
        %v692 = vpop.xlane.xlu0 %691
        %693 = vmax.xlane.f32.xlu0 %v682
        %v694 = vpop.xlane.xlu0 %693
        %v695 = vmax.f32 %v687, %v688
        %696 = vmax.xlane.f32.xlu0 %v695
        %v697 = vpop.xlane.xlu0 %696
        %v698 = vmax.f32 %v689, %v690
        %699 = vmax.xlane.f32.xlu0 %v698
        %v700 = vpop.xlane.xlu0 %699
        %v701 = vmax.f32 %v692, %v697
        %v702 = vmax.f32 %v694, %v700
        %vm703 = vcmp.eq.f32.partialorder %v681, %v701
        %vm704 = vcmp.eq.f32.partialorder %v682, %v702
        %v705 = vsel %vm703, %v479, 1073741824
        %v706 = vsel %vm704, %v480, 1073741824
        %v707 = vand.u32 %v705, 65535
        %v708 = vshra.s32 %v705, 16
        %v709 = vcvt.s32.f32 %v707
        %v710 = vcvt.s32.f32 %v708
        %711 = vmin.xlane.f32.xlu0 %v710
        %v712 = vpop.xlane.xlu0 %711
        %vm713 = vcmp.eq.f32.partialorder %v710, %v712
        %v714 = vsel %vm713, %v709, inf
        %715 = vmin.xlane.f32.xlu0 %v714
        %v716 = vpop.xlane.xlu0 %715
        %v717 = vcvt.f32.s32 %v716
        %v718 = vcvt.f32.s32 %v712
        %v719 = vshll.u32 %v718, 16
        %v720 = vadd.s32 %v719, %v717
        %v721 = vand.u32 %v706, 65535
        %v722 = vshra.s32 %v706, 16
        %v723 = vcvt.s32.f32 %v721
        %v724 = vcvt.s32.f32 %v722
        %725 = vmin.xlane.f32.xlu0 %v724
        %v726 = vpop.xlane.xlu0 %725
        %vm727 = vcmp.eq.f32.partialorder %v724, %v726
        %v728 = vsel %vm727, %v723, inf
        %729 = vmin.xlane.f32.xlu0 %v728
        %v730 = vpop.xlane.xlu0 %729
        %v731 = vcvt.f32.s32 %v730
        %v732 = vcvt.f32.s32 %v726
        %v733 = vshll.u32 %v732, 16
        %v734 = vadd.s32 %v733, %v731
        %vm735 = vcmp.eq.f32.partialorder %v687, %v701
        %vm736 = vcmp.eq.f32.partialorder %v688, %v701
        %vm737 = vcmp.eq.f32.partialorder %v689, %v702
        %vm738 = vcmp.eq.f32.partialorder %v690, %v702
        %v739 = vsel %vm735, %v475, 1073741824
        %v740 = vsel %vm736, %v476, 1073741824
        %v741 = vsel %vm737, %v475, 1073741824
        %v742 = vsel %vm738, %v476, 1073741824
        %vm743 = vcmp.lt.s32.totalorder %v739, %v740
        %v744 = vsel %vm743, %v739, %v740
        %v745 = vand.u32 %v744, 65535
        %v746 = vshra.s32 %v744, 16
        %v747 = vcvt.s32.f32 %v745
        %v748 = vcvt.s32.f32 %v746
        %749 = vmin.xlane.f32.xlu0 %v748
        %v750 = vpop.xlane.xlu0 %749
        %vm751 = vcmp.eq.f32.partialorder %v748, %v750
        %v752 = vsel %vm751, %v747, inf
        %753 = vmin.xlane.f32.xlu0 %v752
        %v754 = vpop.xlane.xlu0 %753
        %v755 = vcvt.f32.s32 %v754
        %v756 = vcvt.f32.s32 %v750
        %v757 = vshll.u32 %v756, 16
        %v758 = vadd.s32 %v757, %v755
        %vm759 = vcmp.lt.s32.totalorder %v741, %v742
        %v760 = vsel %vm759, %v741, %v742
        %v761 = vand.u32 %v760, 65535
        %v762 = vshra.s32 %v760, 16
        %v763 = vcvt.s32.f32 %v761
        %v764 = vcvt.s32.f32 %v762
        %765 = vmin.xlane.f32.xlu0 %v764
        %v766 = vpop.xlane.xlu0 %765
        %vm767 = vcmp.eq.f32.partialorder %v764, %v766
        %v768 = vsel %vm767, %v763, inf
        %769 = vmin.xlane.f32.xlu0 %v768
        %v770 = vpop.xlane.xlu0 %769
        %v771 = vcvt.f32.s32 %v770
        %v772 = vcvt.f32.s32 %v766
        %v773 = vshll.u32 %v772, 16
        %v774 = vadd.s32 %v773, %v771
        %vm775 = vcmp.lt.s32.totalorder %v720, %v758
        %v776 = vsel %vm775, %v720, %v758
        %vm777 = vcmp.lt.s32.totalorder %v734, %v774
        %v778 = vsel %vm777, %v734, %v774
        %vm779 = vcmp.eq.s32.totalorder %v471, 2
        %v780 = vsel %vm779, %v701, %v675
        %v781 = vsel %vm779, %v702, %v676
        %v782 = vsel %vm779, %v776, %v677
        %v783 = vsel %vm779, %v778, %v678
        %vm784 = vcmp.eq.s32.totalorder %v479, %v776
        %vm785 = vcmp.eq.s32.totalorder %v480, %v778
        %v786 = vsel %vm784, -inf, %v681
        %v787 = vsel %vm785, -inf, %v682
        %vm788 = vcmp.eq.s32.totalorder %v475, %v776
        %vm789 = vcmp.eq.s32.totalorder %v476, %v776
        %vm790 = vcmp.eq.s32.totalorder %v475, %v778
        %vm791 = vcmp.eq.s32.totalorder %v476, %v778
        %v792 = vsel %vm788, -inf, %v687
        %v793 = vsel %vm789, -inf, %v688
        %v794 = vsel %vm790, -inf, %v689
        %v795 = vsel %vm791, -inf, %v690
        %796 = vmax.xlane.f32.xlu0 %v786
        %v797 = vpop.xlane.xlu0 %796
        %798 = vmax.xlane.f32.xlu0 %v787
        %v799 = vpop.xlane.xlu0 %798
        %v800 = vmax.f32 %v792, %v793
        %801 = vmax.xlane.f32.xlu0 %v800
        %v802 = vpop.xlane.xlu0 %801
        %v803 = vmax.f32 %v794, %v795
        %804 = vmax.xlane.f32.xlu0 %v803
        %v805 = vpop.xlane.xlu0 %804
        %v806 = vmax.f32 %v797, %v802
        %v807 = vmax.f32 %v799, %v805
        %vm808 = vcmp.eq.f32.partialorder %v786, %v806
        %vm809 = vcmp.eq.f32.partialorder %v787, %v807
        %v810 = vsel %vm808, %v479, 1073741824
        %v811 = vsel %vm809, %v480, 1073741824
        %v812 = vand.u32 %v810, 65535
        %v813 = vshra.s32 %v810, 16
        %v814 = vcvt.s32.f32 %v812
        %v815 = vcvt.s32.f32 %v813
        %816 = vmin.xlane.f32.xlu0 %v815
        %v817 = vpop.xlane.xlu0 %816
        %vm818 = vcmp.eq.f32.partialorder %v815, %v817
        %v819 = vsel %vm818, %v814, inf
        %820 = vmin.xlane.f32.xlu0 %v819
        %v821 = vpop.xlane.xlu0 %820
        %v822 = vcvt.f32.s32 %v821
        %v823 = vcvt.f32.s32 %v817
        %v824 = vshll.u32 %v823, 16
        %v825 = vadd.s32 %v824, %v822
        %v826 = vand.u32 %v811, 65535
        %v827 = vshra.s32 %v811, 16
        %v828 = vcvt.s32.f32 %v826
        %v829 = vcvt.s32.f32 %v827
        %830 = vmin.xlane.f32.xlu0 %v829
        %v831 = vpop.xlane.xlu0 %830
        %vm832 = vcmp.eq.f32.partialorder %v829, %v831
        %v833 = vsel %vm832, %v828, inf
        %834 = vmin.xlane.f32.xlu0 %v833
        %v835 = vpop.xlane.xlu0 %834
        %v836 = vcvt.f32.s32 %v835
        %v837 = vcvt.f32.s32 %v831
        %v838 = vshll.u32 %v837, 16
        %v839 = vadd.s32 %v838, %v836
        %vm840 = vcmp.eq.f32.partialorder %v792, %v806
        %vm841 = vcmp.eq.f32.partialorder %v793, %v806
        %vm842 = vcmp.eq.f32.partialorder %v794, %v807
        %vm843 = vcmp.eq.f32.partialorder %v795, %v807
        %v844 = vsel %vm840, %v475, 1073741824
        %v845 = vsel %vm841, %v476, 1073741824
        %v846 = vsel %vm842, %v475, 1073741824
        %v847 = vsel %vm843, %v476, 1073741824
        %vm848 = vcmp.lt.s32.totalorder %v844, %v845
        %v849 = vsel %vm848, %v844, %v845
        %v850 = vand.u32 %v849, 65535
        %v851 = vshra.s32 %v849, 16
        %v852 = vcvt.s32.f32 %v850
        %v853 = vcvt.s32.f32 %v851
        %854 = vmin.xlane.f32.xlu0 %v853
        %v855 = vpop.xlane.xlu0 %854
        %vm856 = vcmp.eq.f32.partialorder %v853, %v855
        %v857 = vsel %vm856, %v852, inf
        %858 = vmin.xlane.f32.xlu0 %v857
        %v859 = vpop.xlane.xlu0 %858
        %v860 = vcvt.f32.s32 %v859
        %v861 = vcvt.f32.s32 %v855
        %v862 = vshll.u32 %v861, 16
        %v863 = vadd.s32 %v862, %v860
        %vm864 = vcmp.lt.s32.totalorder %v846, %v847
        %v865 = vsel %vm864, %v846, %v847
        %v866 = vand.u32 %v865, 65535
        %v867 = vshra.s32 %v865, 16
        %v868 = vcvt.s32.f32 %v866
        %v869 = vcvt.s32.f32 %v867
        %870 = vmin.xlane.f32.xlu0 %v869
        %v871 = vpop.xlane.xlu0 %870
        %vm872 = vcmp.eq.f32.partialorder %v869, %v871
        %v873 = vsel %vm872, %v868, inf
        %874 = vmin.xlane.f32.xlu0 %v873
        %v875 = vpop.xlane.xlu0 %874
        %v876 = vcvt.f32.s32 %v875
        %v877 = vcvt.f32.s32 %v871
        %v878 = vshll.u32 %v877, 16
        %v879 = vadd.s32 %v878, %v876
        %vm880 = vcmp.lt.s32.totalorder %v825, %v863
        %v881 = vsel %vm880, %v825, %v863
        %vm882 = vcmp.lt.s32.totalorder %v839, %v879
        %v883 = vsel %vm882, %v839, %v879
        %vm884 = vcmp.eq.s32.totalorder %v471, 3
        %v885 = vsel %vm884, %v806, %v780
        %v886 = vsel %vm884, %v807, %v781
        %v887 = vsel %vm884, %v881, %v782
        %v888 = vsel %vm884, %v883, %v783
        %889 = vst [vmem:[%s285] sm:$0xff] %v885
        %890 = vst [vmem:[%s285 + $0x8] sm:$0xff] %v886
        %891 = vst [vmem:[%s292] sm:$0xff] %v887
        %892 = vst [vmem:[%s292 + $0x8] sm:$0xff] %v888
        %s893 = sand.u32 %s126, 1
        %s894 = scalar_lea.sflag [#allocation4], %s893
        %s895 = sand.u32 %s126, 1
        %s896 = smul.addr %s895, 16
        %s897 = scalar_lea.vmem [#allocation7], %s896
        %s898 = sand.u32 %s152, 1
        %s899 = scalar_lea.sflag [#allocation9], %s898
        %s900 = sand.u32 %s152, 1
        %s901 = smul.addr %s900, 16
        %s902 = scalar_lea.vmem [#allocation8], %s901
        // Predicated region
        $region45: #{tpu_custom_call.1} parent=31 // pred_check
          %p903 = pneg %p136
        $region46: #{tpu_custom_call.1} parent=31 // pred_check_branch
          %905 = sbr.rel (%p903) target = $region48
        $region47: #{tpu_custom_call.1} parent=31 // pred_region
          %s906 = smul.u32 2, %s32
          %s908 = ssub.s32 256, 256
          %909 = vsyncadd %s894, %s908
          %s910 = smul.addr %s906, 128
          %s911 = scalar_lea.hbm %s3, %s910
          %s912 = sshll.u32 %s897, 4
          %s913 = int_to_ptr.vmem [resolvable:$true] %s912
          %918 = dma.vmem_to_hbm [thread:$0]  %s913, 256, %s911, %s894, 128, 128, 8
        $region48: #{tpu_custom_call.1} parent=31 // pred_fallthru
          _
        // Predicated region
        $region49: #{tpu_custom_call.1} parent=31 // pred_check
          %p919 = pneg %p162
        $region50: #{tpu_custom_call.1} parent=31 // pred_check_branch
          %921 = sbr.rel (%p919) target = $region52
        $region51: #{tpu_custom_call.1} parent=31 // pred_region
          %s922 = smul.u32 2, %s32
          %s924 = ssub.s32 256, 256
          %925 = vsyncadd %s899, %s924
          %s926 = smul.addr %s922, 128
          %s927 = scalar_lea.hbm %s4, %s926
          %s928 = sshll.u32 %s902, 4
          %s929 = int_to_ptr.vmem [resolvable:$true] %s928
          %934 = dma.vmem_to_hbm [thread:$0]  %s929, 256, %s927, %s899, 128, 128, 8
        $region52: #{tpu_custom_call.1} parent=31 // pred_fallthru
          _
      $region32: #{tpu_custom_call.1} parent=5 // pred_fallthru
        _
      %p935 = scmp.le.s32.totalorder 2, %s23
      // Predicated region
      $region53: #{tpu_custom_call.1} parent=5 // pred_check
        %p936 = pneg %p935
      $region54: #{tpu_custom_call.1} parent=5 // pred_check_branch
        %938 = sbr.rel (%p936) target = $region56
      $region55: #{tpu_custom_call.1} parent=5 // pred_region
        %s939 = ssub.s32 %s23, 2
        // Predicated region
        $region57: #{tpu_custom_call.1} parent=55 // pred_check
          %p940 = pneg %p142
        $region58: #{tpu_custom_call.1} parent=55 // pred_check_branch
          %942 = sbr.rel (%p940) target = $region60
        $region59: #{tpu_custom_call.1} parent=55 // pred_region
          %s943 = sand.u32 %s127, 1
          %s944 = scalar_lea.sflag [#allocation4], %s943
          %s945 = sand.u32 %s127, 1
          %s946 = smul.addr %s945, 16
          %s947 = scalar_lea.vmem [#allocation7], %s946
          %948 = dma.done %s944, 256
        $region60: #{tpu_custom_call.1} parent=55 // pred_fallthru
          _
        // Predicated region
        $region61: #{tpu_custom_call.1} parent=55 // pred_check
          %p949 = pneg %p168
        $region62: #{tpu_custom_call.1} parent=55 // pred_check_branch
          %951 = sbr.rel (%p949) target = $region64
        $region63: #{tpu_custom_call.1} parent=55 // pred_region
          %s952 = sand.u32 %s153, 1
          %s953 = scalar_lea.sflag [#allocation9], %s952
          %s954 = sand.u32 %s153, 1
          %s955 = smul.addr %s954, 16
          %s956 = scalar_lea.vmem [#allocation8], %s955
          %957 = dma.done %s953, 256
        $region64: #{tpu_custom_call.1} parent=55 // pred_fallthru
          _
      $region56: #{tpu_custom_call.1} parent=5 // pred_fallthru
        _
    $region6: #{tpu_custom_call.1} parent=1 // loop_footer
      %s27 = sadd.s32 1, %s23
    $region7: #{tpu_custom_call.1} parent=1 // loop_footer_branch
      %22 = sbr.rel target = $region3
    $region8: #{tpu_custom_call.1} parent=1 // loop_exit
      _
    %958 = vsyncpa [#allocation3], 1
    %s959 = scalar_lea.sflag [#allocation3], 1
    %960 = vsyncpa %s959, 1
    %961 = vsyncpa [#allocation6], 1
    %s962 = scalar_lea.sflag [#allocation6], 1
    %963 = vsyncpa %s962, 1
    %964 = vsyncpa [#allocation4], 1
    %s965 = scalar_lea.sflag [#allocation4], 1
    %966 = vsyncpa %s965, 1
    %967 = vsyncpa [#allocation9], 1
    %s968 = scalar_lea.sflag [#allocation9], 1
    %969 = vsyncpa %s968, 1

</llo_original>
